<compile_context>
chip_gen: v5e
topology: v5e:2x2
jax: 0.10.0
libtpu: 0.0.40
codegen_flags: <defaults>
</compile_context>

<pallas_src>
import jax
import jax.numpy as jnp
from jax.experimental import pallas as pl
from jax.experimental.pallas import tpu as pltpu


def _sigmoid(z):
    return 1.0 / (1.0 + jnp.exp(-z))


# ------------------------------ Pallas kernel ------------------------------ #

def _cbam_kernel(x_ref, w1_ref, w2_ref, msp_ref, o_ref):
    x = x_ref[0]                                     # [C, HW] f32, lane-dense

    # ---------------- channel attention (avg/max pool -> shared MLP) --------
    avg_c = jnp.mean(x, axis=1, keepdims=True)       # [C, 1]
    max_c = jnp.max(x, axis=1, keepdims=True)        # [C, 1]
    pooled = jnp.concatenate([avg_c, max_c], axis=1)  # [C, 2]  (avg | max columns)

    w1 = w1_ref[...]                                 # [Chp, C]  fc1 weight (zero-pad rows)
    w2 = w2_ref[...]                                 # [C, Chp]  fc2 weight (zero-pad cols)
    h = jnp.maximum(jnp.dot(w1, pooled, preferred_element_type=jnp.float32), 0.0)  # [Chp, 2]
    out2 = jnp.dot(w2, h, preferred_element_type=jnp.float32)                       # [C, 2]
    logits_c = jnp.sum(out2, axis=1, keepdims=True)  # avg_out + max_out  -> [C, 1]
    s_c = _sigmoid(logits_c)                         # [C, 1]
    x1 = x * s_c                                     # [C, HW]  (x * channel attention)

    # ---------------- spatial attention (channel pool -> 7x7 conv) ----------
    avg_sp = jnp.mean(x1, axis=0, keepdims=True)     # [1, HW]
    max_sp = jnp.max(x1, axis=0, keepdims=True)      # [1, HW]
    pooled_sp = jnp.concatenate([avg_sp, max_sp], axis=1)   # [1, 2*HW]
    # zero-padded 7x7 cross-correlation == single row-vector matmul
    logits_sp = jnp.dot(pooled_sp, msp_ref[...],
                        preferred_element_type=jnp.float32)  # [1, HW]
    s_sp = _sigmoid(logits_sp)                       # [1, HW]

    o_ref[0] = (x1 * s_sp).astype(o_ref.dtype)       # (x * ch_att) * spatial attention


# ------------------------------ host wrapper ------------------------------- #

def _spatial_conv_matrix_T(w_sp, h, w):
    """w_sp: [1, 2, k, k] Conv2d weight.  Returns one [2*HW, HW] matrix M such
    that   out_row = concat([avg_row, max_row]) @ M   reproduces the
    zero-padded k x k cross-correlation on the flattened (row-major) H*W map."""
    k = w_sp.shape[-1]
    pad = k // 2
    hw = h * w
    pi = jnp.arange(hw, dtype=jnp.int32) // w
    pj = jnp.arange(hw, dtype=jnp.int32) % w
    dy = pi[None, :] - pi[:, None] + pad             # [out p, in q]
    dx = pj[None, :] - pj[:, None] + pad
    valid = (dy >= 0) & (dy < k) & (dx >= 0) & (dx < k)
    idx = jnp.where(valid, dy * k + dx, 0)
    mats = []
    for c in range(w_sp.shape[1]):                   # channel 0 = avg, channel 1 = max
        wflat = w_sp[0, c].reshape(-1).astype(jnp.float32)
        m = jnp.where(valid, wflat[idx], 0.0)        # M[p, q]
        mats.append(m.T)                             # [q, p] for row-vector matmul
    return jnp.concatenate(mats, axis=0)             # [2*HW, HW]


@jax.jit
def cbam_forward(x, w_fc1, w_fc2, w_spatial):
    """cbam_block.forward: x -> x * ChannelAttention(x) -> * SpatialAttention(.)"""
    n, c, h, w = x.shape
    hw = h * w
    # Tile-friendly layout requirements for this implementation.
    assert hw % 128 == 0, "H*W must be a multiple of 128 (lane-dense layout)"
    assert c % 8 == 0, "C must be a multiple of 8 (sublane alignment)"

    ch = w_fc1.shape[0]
    ch_p = max(8, ((ch + 7) // 8) * 8)               # pad hidden dim; zero rows/cols are inert
    w1 = jnp.zeros((ch_p, c), jnp.float32).at[:ch, :].set(
        w_fc1.reshape(ch, c).astype(jnp.float32))
    w2 = jnp.zeros((c, ch_p), jnp.float32).at[:, :ch].set(
        w_fc2.reshape(c, ch).astype(jnp.float32))

    m_sp = _spatial_conv_matrix_T(w_spatial, h, w)   # [2*HW, HW] (tiny, resident)

    x2d = x.reshape(n, c, hw).astype(jnp.float32)    # NCHW -> [N, C, HW] (free reshape)

    out2d = pl.pallas_call(
        _cbam_kernel,
        out_shape=jax.ShapeDtypeStruct((n, c, hw), jnp.float32),
        grid_spec=pltpu.PrefetchScalarGridSpec(
            num_scalar_prefetch=0,
            grid=(n,),
            in_specs=[
                pl.BlockSpec((1, c, hw), lambda i: (i, 0, 0)),   # x: one batch elem / step
                pl.BlockSpec((ch_p, c), lambda i: (0, 0)),       # fc1 weight (resident)
                pl.BlockSpec((c, ch_p), lambda i: (0, 0)),       # fc2 weight (resident)
                pl.BlockSpec((2 * hw, hw), lambda i: (0, 0)),    # spatial conv matrix
            ],
            out_specs=pl.BlockSpec((1, c, hw), lambda i: (i, 0, 0)),
        ),
        compiler_params=pltpu.CompilerParams(
            dimension_semantics=("parallel",)),                  # shard batch across TCs
    )(x2d, w1, w2, m_sp)

    return out2d.reshape(n, c, h, w)


# ------------------------------- reference --------------------------------- #

def _reference(x, w_fc1, w_fc2, w_sp):
    n, c, h, w = x.shape
    ch = w_fc1.shape[0]
    w1 = w_fc1.reshape(ch, c).astype(jnp.float32)
    w2 = w_fc2.reshape(c, ch).astype(jnp.float32)
    hp = jax.lax.Precision.HIGHEST

    # channel attention
    avg = jnp.mean(x, axis=(2, 3))                      # [N, C]
    mx = jnp.max(x, axis=(2, 3))                        # [N, C]

    def mlp(v):
        hid = jnp.maximum(jnp.dot(v, w1.T, precision=hp), 0.0)
        return jnp.dot(hid, w2.T, precision=hp)

    s_c = jax.nn.sigmoid(mlp(avg) + mlp(mx))            # [N, C]
    x1 = x * s_c[:, :, None, None]

    # spatial attention
    avg_sp = jnp.mean(x1, axis=1, keepdims=True)        # [N,1,H,W]
    max_sp = jnp.max(x1, axis=1, keepdims=True)         # [N,1,H,W]
    pooled = jnp.concatenate([avg_sp, max_sp], axis=1)  # [N,2,H,W]
    k = w_sp.shape[-1]
    pad = k // 2
    conv = jax.lax.conv_general_dilated(
        pooled.astype(jnp.float32), w_sp.astype(jnp.float32),
        window_strides=(1, 1), padding=[(pad, pad), (pad, pad)],
        dimension_numbers=("NCHW", "OIHW", "NCHW"), precision=hp)   # [N,1,H,W]
    s_sp = jax.nn.sigmoid(conv)
    return x1 * s_sp


# ---------------------------------- main ------------------------------------ #

if __name__ == "__main__":
    # cbam_block(channel=64, ratio=16, kernel_size=7); channel must be >= ratio.
    N, C, H, W = 2, 64, 16, 16
    RATIO, KSIZE = 16, 7
    CH = C // RATIO

    key = jax.random.PRNGKey(0)
    k1, k2, k3, k4 = jax.random.split(key, 4)
    x = jax.random.normal(k1, (N, C, H, W), dtype=jnp.float32)
    w_fc1 = 0.1 * jax.random.normal(k2, (CH, C, 1, 1), dtype=jnp.float32)     # fc1 (no bias)
    w_fc2 = 0.1 * jax.random.normal(k3, (C, CH, 1, 1), dtype=jnp.float32)     # fc2 (no bias)
    w_sp = 0.1 * jax.random.normal(k4, (1, 2, KSIZE, KSIZE), dtype=jnp.float32)  # 7x7 (no bias)

    out = cbam_forward(x, w_fc1, w_fc2, w_sp)
    out = jax.block_until_ready(out)

    ref = _reference(x, w_fc1, w_fc2, w_sp)
    assert out.shape == (N, C, H, W), out.shape
    max_err = float(jnp.max(jnp.abs(out - ref)))
    assert jnp.allclose(out, ref, atol=5e-4, rtol=5e-4), max_err

    print("KERNEL_OK")
</pallas_src>

<mosaic_0001>
module attributes {stable_mosaic.version = 11 : i64} {
  func.func @_cbam_kernel(%arg0: i32, %arg1: memref<1x64x256xf32, #tpu.memory_space<vmem>>, %arg2: memref<8x64xf32, #tpu.memory_space<vmem>>, %arg3: memref<64x8xf32, #tpu.memory_space<vmem>>, %arg4: memref<512x256xf32, #tpu.memory_space<vmem>>, %arg5: memref<1x64x256xf32, #tpu.memory_space<vmem>>) attributes {dimension_semantics = [#tpu.dimension_semantics<parallel>], iteration_bounds = array<i64: 2>, scalar_prefetch = 0 : i64, scratch_operands = 0 : i64, tpu.core_type = #tpu.core_type<tc>, window_params = [{transform_indices = @transform_0, window_bounds = array<i64: 1, 64, 256>}, {pipeline_mode = #tpu.pipeline_mode<synchronous>, transform_indices = @transform_1, window_bounds = array<i64: 8, 64>}, {pipeline_mode = #tpu.pipeline_mode<synchronous>, transform_indices = @transform_2, window_bounds = array<i64: 64, 8>}, {pipeline_mode = #tpu.pipeline_mode<synchronous>, transform_indices = @transform_3, window_bounds = array<i64: 512, 256>}, {transform_indices = @transform_4, window_bounds = array<i64: 1, 64, 256>}]} {
    %c0 = arith.constant 0 : index
    %c0_0 = arith.constant 0 : index
    %c0_1 = arith.constant 0 : index
    %0 = vector.load %arg1[%c0, %c0_0, %c0_1] : memref<1x64x256xf32, #tpu.memory_space<vmem>>, vector<1x64x256xf32>
    %1 = vector.shape_cast %0 : vector<1x64x256xf32> to vector<64x256xf32>
    %cst = arith.constant dense<0.000000e+00> : vector<64xf32>
    %2 = vector.multi_reduction <add>, %1, %cst [1] : vector<64x256xf32> to vector<64xf32>
    %3 = vector.shape_cast %2 : vector<64xf32> to vector<64x1xf32>
    %cst_2 = arith.constant 2.560000e+02 : f32
    %4 = vector.broadcast %cst_2 : f32 to vector<64x1xf32>
    %5 = arith.divf %3, %4 : vector<64x1xf32>
    %cst_3 = arith.constant dense<0xFF800000> : vector<64xf32>
    %6 = vector.multi_reduction <maximumf>, %1, %cst_3 [1] : vector<64x256xf32> to vector<64xf32>
    %7 = vector.shape_cast %6 : vector<64xf32> to vector<64x1xf32>
    %8 = tpu.concatenate %5, %7 in 1 : vector<64x1xf32>, vector<64x1xf32> -> vector<64x2xf32>
    %c0_4 = arith.constant 0 : index
    %c0_5 = arith.constant 0 : index
    %9 = vector.load %arg2[%c0_4, %c0_5] : memref<8x64xf32, #tpu.memory_space<vmem>>, vector<8x64xf32>
    %c0_6 = arith.constant 0 : index
    %c0_7 = arith.constant 0 : index
    %10 = vector.load %arg3[%c0_6, %c0_7] : memref<64x8xf32, #tpu.memory_space<vmem>>, vector<64x8xf32>
    %cst_8 = arith.constant dense<0.000000e+00> : vector<8x2xf32>
    %11 = tpu.matmul %9, %8, %cst_8 {dimension_numbers = #tpu.dot_dimension_numbers<[1], [0], [0], [1], [0, 0, 1, 1], [], []>} : vector<8x64xf32>, vector<64x2xf32>, vector<8x2xf32> -> vector<8x2xf32>
    %cst_9 = arith.constant 0.000000e+00 : f32
    %12 = vector.broadcast %cst_9 : f32 to vector<8x2xf32>
    %13 = arith.maximumf %11, %12 : vector<8x2xf32>
    %cst_10 = arith.constant dense<0.000000e+00> : vector<64x2xf32>
    %14 = tpu.matmul %10, %13, %cst_10 {dimension_numbers = #tpu.dot_dimension_numbers<[1], [0], [0], [1], [0, 0, 1, 1], [], []>} : vector<64x8xf32>, vector<8x2xf32>, vector<64x2xf32> -> vector<64x2xf32>
    %cst_11 = arith.constant dense<0.000000e+00> : vector<64xf32>
    %15 = vector.multi_reduction <add>, %14, %cst_11 [1] : vector<64x2xf32> to vector<64xf32>
    %16 = vector.shape_cast %15 : vector<64xf32> to vector<64x1xf32>
    %cst_12 = arith.constant 0.000000e+00 : f32
    %17 = vector.broadcast %cst_12 : f32 to vector<64x1xf32>
    %18 = arith.subf %17, %16 : vector<64x1xf32>
    %19 = math.exp %18 : vector<64x1xf32>
    %cst_13 = arith.constant 1.000000e+00 : f32
    %20 = vector.broadcast %cst_13 : f32 to vector<64x1xf32>
    %21 = arith.addf %20, %19 : vector<64x1xf32>
    %cst_14 = arith.constant 1.000000e+00 : f32
    %22 = vector.broadcast %cst_14 : f32 to vector<64x1xf32>
    %23 = arith.divf %22, %21 : vector<64x1xf32>
    %24 = vector.broadcast %23 : vector<64x1xf32> to vector<64x256xf32>
    %25 = arith.mulf %1, %24 : vector<64x256xf32>
    %cst_15 = arith.constant dense<0.000000e+00> : vector<256xf32>
    %26 = vector.multi_reduction <add>, %25, %cst_15 [0] : vector<64x256xf32> to vector<256xf32>
    %27 = vector.shape_cast %26 : vector<256xf32> to vector<1x256xf32>
    %cst_16 = arith.constant 6.400000e+01 : f32
    %28 = vector.broadcast %cst_16 : f32 to vector<1x256xf32>
    %29 = arith.divf %27, %28 : vector<1x256xf32>
    %cst_17 = arith.constant dense<0xFF800000> : vector<256xf32>
    %30 = vector.multi_reduction <maximumf>, %25, %cst_17 [0] : vector<64x256xf32> to vector<256xf32>
    %31 = vector.shape_cast %30 : vector<256xf32> to vector<1x256xf32>
    %32 = tpu.concatenate %29, %31 in 1 : vector<1x256xf32>, vector<1x256xf32> -> vector<1x512xf32>
    %c0_18 = arith.constant 0 : index
    %c0_19 = arith.constant 0 : index
    %33 = vector.load %arg4[%c0_18, %c0_19] : memref<512x256xf32, #tpu.memory_space<vmem>>, vector<512x256xf32>
    %cst_20 = arith.constant dense<0.000000e+00> : vector<1x256xf32>
    %34 = tpu.matmul %32, %33, %cst_20 {dimension_numbers = #tpu.dot_dimension_numbers<[1], [0], [0], [1], [0, 0, 1, 1], [], []>} : vector<1x512xf32>, vector<512x256xf32>, vector<1x256xf32> -> vector<1x256xf32>
    %cst_21 = arith.constant 0.000000e+00 : f32
    %35 = vector.broadcast %cst_21 : f32 to vector<1x256xf32>
    %36 = arith.subf %35, %34 : vector<1x256xf32>
    %37 = math.exp %36 : vector<1x256xf32>
    %cst_22 = arith.constant 1.000000e+00 : f32
    %38 = vector.broadcast %cst_22 : f32 to vector<1x256xf32>
    %39 = arith.addf %38, %37 : vector<1x256xf32>
    %cst_23 = arith.constant 1.000000e+00 : f32
    %40 = vector.broadcast %cst_23 : f32 to vector<1x256xf32>
    %41 = arith.divf %40, %39 : vector<1x256xf32>
    %42 = vector.broadcast %41 : vector<1x256xf32> to vector<64x256xf32>
    %43 = arith.mulf %25, %42 : vector<64x256xf32>
    %c0_24 = arith.constant 0 : index
    %c0_25 = arith.constant 0 : index
    %c0_26 = arith.constant 0 : index
    %44 = vector.load %arg5[%c0_24, %c0_25, %c0_26] : memref<1x64x256xf32, #tpu.memory_space<vmem>>, vector<1x64x256xf32>
    %45 = vector.shape_cast %44 : vector<1x64x256xf32> to vector<64x256xf32>
    %46 = vector.shape_cast %43 : vector<64x256xf32> to vector<1x64x256xf32>
    tpu.vector_store %arg5[%c0_24, %c0_25, %c0_26], %46 {strides = array<i32>} : memref<1x64x256xf32, #tpu.memory_space<vmem>>, vector<1x64x256xf32>,
    return
  }
  func.func @transform_0(%arg0: i32) -> (i32, i32, i32) {
    %c0_i32 = arith.constant 0 : i32
    %c0_i32_0 = arith.constant 0 : i32
    %c0_i32_1 = arith.constant 0 : i32
    return %arg0, %c0_i32, %c0_i32_0 : i32, i32, i32
  }
  func.func @transform_1(%arg0: i32) -> (i32, i32) {
    %c0_i32 = arith.constant 0 : i32
    %c0_i32_0 = arith.constant 0 : i32
    %c0_i32_1 = arith.constant 0 : i32
    return %c0_i32, %c0_i32_0 : i32, i32
  }
  func.func @transform_2(%arg0: i32) -> (i32, i32) {
    %c0_i32 = arith.constant 0 : i32
    %c0_i32_0 = arith.constant 0 : i32
    %c0_i32_1 = arith.constant 0 : i32
    return %c0_i32, %c0_i32_0 : i32, i32
  }
  func.func @transform_3(%arg0: i32) -> (i32, i32) {
    %c0_i32 = arith.constant 0 : i32
    %c0_i32_0 = arith.constant 0 : i32
    %c0_i32_1 = arith.constant 0 : i32
    return %c0_i32, %c0_i32_0 : i32, i32
  }
  func.func @transform_4(%arg0: i32) -> (i32, i32, i32) {
    %c0_i32 = arith.constant 0 : i32
    %c0_i32_0 = arith.constant 0 : i32
    %c0_i32_1 = arith.constant 0 : i32
    return %arg0, %c0_i32, %c0_i32_0 : i32, i32, i32
  }
}

</mosaic_0001>

<llo_original>
// kernel: squeeze.2
$region0: #{squeeze.2}
  %s0 = inlined_call_operand.vmem [shape: f32[7,7], index: 0, kind: input, shape index: {}]
  %s1 = inlined_call_operand.vmem [shape: f32[49], index: 1, kind: output, shape index: {}]
  $region1: #{squeeze.2} parent=0
    #allocation0 [shape = 'u8[4096]{0}', space=vmem, size = 0x1000, scoped, tag = 'scoped mem for output reshape']
    %v2 = vld [vmem:[%s0] sm:$0x1]
    %vm3 = vcmask 56320
    %4 = vst.msk [vmem:[#allocation0] sm:$0x1] %vm3, %v2
    %s5 = scalar_lea.vmem %s0, 6
    %v6 = vld [vmem:[%s5] sm:$0x1]
    %7 = vrot.lane.b32.xlu0 %v6, 42
    %v8 = vpop.permute.xlu0 %7
    %vm9 = vcmask 400720
    %10 = vst.msk [vmem:[#allocation0] sm:$0x1] %vm9, %v8
    %s11 = scalar_lea.vmem %s0, 5
    %v12 = vld [vmem:[%s11] sm:$0x1]
    %13 = vrot.lane.b32.xlu0 %v12, 35
    %v14 = vpop.permute.xlu0 %13
    %vm15 = vcmask 343320
    %16 = vst.msk [vmem:[#allocation0] sm:$0x1] %vm15, %v14
    %s17 = scalar_lea.vmem %s0, 4
    %v18 = vld [vmem:[%s17] sm:$0x1]
    %19 = vrot.lane.b32.xlu0 %v18, 28
    %v20 = vpop.permute.xlu0 %19
    %vm21 = vcmask 285920
    %22 = vst.msk [vmem:[#allocation0] sm:$0x1] %vm21, %v20
    %s23 = scalar_lea.vmem %s0, 3
    %v24 = vld [vmem:[%s23] sm:$0x1]
    %25 = vrot.lane.b32.xlu0 %v24, 21
    %v26 = vpop.permute.xlu0 %25
    %vm27 = vcmask 228520
    %28 = vst.msk [vmem:[#allocation0] sm:$0x1] %vm27, %v26
    %s29 = scalar_lea.vmem %s0, 2
    %v30 = vld [vmem:[%s29] sm:$0x1]
    %31 = vrot.lane.b32.xlu0 %v30, 14
    %v32 = vpop.permute.xlu0 %31
    %vm33 = vcmask 171120
    %34 = vst.msk [vmem:[#allocation0] sm:$0x1] %vm33, %v32
    %s35 = scalar_lea.vmem %s0, 1
    %v36 = vld [vmem:[%s35] sm:$0x1]
    %37 = vrot.lane.b32.xlu0 %v36, 7
    %v38 = vpop.permute.xlu0 %37
    %vm39 = vcmask 113720
    %40 = vst.msk [vmem:[#allocation0] sm:$0x1] %vm39, %v38
    %s42 = ssub.s32 2, 1
    %v43 = vld [vmem:[#allocation0] sm:%s42]
    %s45 = ssub.s32 2, 1
    %46 = vst [vmem:[%s1] sm:%s45] %v43

// kernel: cbam_forward.1
$region0: #{cbam_forward.1}
  #allocation0 [shape = 'u32[]', space=smem, size = 0x4, offset = 0x4, fixed_abs, tag = 'smem constant byte address 0x4 - core index']
  #allocation1 [shape = 'u32[72,128]{1,0:T(1,128)}', space=vmem, size = 0x9000, scoped, tag = 'internal scratch']
  %s0 = inlined_call_operand.vmem [shape: f32[2,64,256], index: 0, kind: input, shape index: {}]
  %s1 = inlined_call_operand.vmem [shape: f32[8,64], index: 1, kind: input, shape index: {}]
  %s2 = inlined_call_operand.vmem [shape: f32[64,8], index: 2, kind: input, shape index: {}]
  %s3 = inlined_call_operand.vmem [shape: f32[512,256], index: 3, kind: input, shape index: {}]
  %s4 = inlined_call_operand.vmem [shape: f32[2,64,256], index: 4, kind: output, shape index: {}]
  %s5 = sld [smem:[#allocation0]]
  $region49: #{cbam_forward.1} parent=0
    _
  %s7 = ssub.s32 1, %s5
  %s8 = scalar_select 0, %s7, %s5
  loop: start=0, step=1, limit=4
  $region2: #{cbam_forward.1} parent=0 // loop_pre_header
    _
  $region3: #{cbam_forward.1} parent=0 // loop_header
    %s10 = sphi 0, %s14
    %p11 = scmp.ge.s32.totalorder %s10, 4
    %s20 = sphi 0, %s22
    %s23 = sphi 0, %s20
    %s24 = sphi 0, %s23
    %s40 = sphi 0, %s24
    %s44 = sphi 0, %s44
    %s46 = sphi 0, %s44
    %s47 = sphi 0, %s46
    %s61 = sphi 0, %s47
    %s65 = sphi 0, %s65
    %s67 = sphi 0, %s65
    %s68 = sphi 0, %s67
    %s82 = sphi 0, %s68
    %s86 = sphi 0, %s86
    %s88 = sphi 0, %s86
    %s89 = sphi 0, %s88
    %s103 = sphi 0, %s89
    %s109 = sphi 0, %s111
    %s112 = sphi 0, %s109
    %s113 = sphi 0, %s112
    %s129 = sphi 0, %s113
  $region4: #{cbam_forward.1} parent=0 // loop_header_branch
    %13 = sbr.rel (%p11) target = $region8
  $region5: #{cbam_forward.1} parent=0 // loop_body
    %s15 = ssub.s32 %s10, 1
    %s16 = ssub.s32 %s10, 2
    %s17 = sadd.s32 %s10, 1
    %s18 = ssub.s32 %s10, %s17
    %p19 = scmp.eq.s32.totalorder %s18, 0
    %s21 = sadd.s32 %s20, 1
    %s22 = scalar_select %p19, %s20, %s21
    %p25 = pneg %p19
    %p26 = scmp.eq.s32.totalorder %s10, 1
    %p27 = por %p25, %p26
    %p28 = scmp.ne.s32.totalorder %s20, %s23
    %p29 = scmp.eq.s32.totalorder %s10, 0
    %p30 = por %p28, %p29
    %p31 = scmp.ne.s32.totalorder %s20, %s23
    %p32 = scmp.eq.s32.totalorder %s15, 1
    %p33 = por %p31, %p32
    %p34 = scmp.ne.s32.totalorder %s23, %s24
    %p35 = scmp.eq.s32.totalorder %s15, 0
    %p36 = por %p34, %p35
    %p37 = scmp.ne.s32.totalorder %s23, %s24
    %p38 = scmp.eq.s32.totalorder %s16, 1
    %p39 = por %p37, %p38
    %p41 = scmp.ne.s32.totalorder %s24, %s40
    %p42 = scmp.eq.s32.totalorder %s16, 0
    %p43 = por %p41, %p42
    %s45 = sadd.s32 %s44, 1
    %p48 = scmp.eq.s32.totalorder %s10, 1
    %p49 = scmp.ne.s32.totalorder %s44, %s46
    %p50 = scmp.eq.s32.totalorder %s10, 0
    %p51 = por %p49, %p50
    %p52 = scmp.ne.s32.totalorder %s44, %s46
    %p53 = scmp.eq.s32.totalorder %s15, 1
    %p54 = por %p52, %p53
    %p55 = scmp.ne.s32.totalorder %s46, %s47
    %p56 = scmp.eq.s32.totalorder %s15, 0
    %p57 = por %p55, %p56
    %p58 = scmp.ne.s32.totalorder %s46, %s47
    %p59 = scmp.eq.s32.totalorder %s16, 1
    %p60 = por %p58, %p59
    %p62 = scmp.ne.s32.totalorder %s47, %s61
    %p63 = scmp.eq.s32.totalorder %s16, 0
    %p64 = por %p62, %p63
    %s66 = sadd.s32 %s65, 1
    %p69 = scmp.eq.s32.totalorder %s10, 1
    %p70 = scmp.ne.s32.totalorder %s65, %s67
    %p71 = scmp.eq.s32.totalorder %s10, 0
    %p72 = por %p70, %p71
    %p73 = scmp.ne.s32.totalorder %s65, %s67
    %p74 = scmp.eq.s32.totalorder %s15, 1
    %p75 = por %p73, %p74
    %p76 = scmp.ne.s32.totalorder %s67, %s68
    %p77 = scmp.eq.s32.totalorder %s15, 0
    %p78 = por %p76, %p77
    %p79 = scmp.ne.s32.totalorder %s67, %s68
    %p80 = scmp.eq.s32.totalorder %s16, 1
    %p81 = por %p79, %p80
    %p83 = scmp.ne.s32.totalorder %s68, %s82
    %p84 = scmp.eq.s32.totalorder %s16, 0
    %p85 = por %p83, %p84
    %s87 = sadd.s32 %s86, 1
    %p90 = scmp.eq.s32.totalorder %s10, 1
    %p91 = scmp.ne.s32.totalorder %s86, %s88
    %p92 = scmp.eq.s32.totalorder %s10, 0
    %p93 = por %p91, %p92
    %p94 = scmp.ne.s32.totalorder %s86, %s88
    %p95 = scmp.eq.s32.totalorder %s15, 1
    %p96 = por %p94, %p95
    %p97 = scmp.ne.s32.totalorder %s88, %s89
    %p98 = scmp.eq.s32.totalorder %s15, 0
    %p99 = por %p97, %p98
    %p100 = scmp.ne.s32.totalorder %s88, %s89
    %p101 = scmp.eq.s32.totalorder %s16, 1
    %p102 = por %p100, %p101
    %p104 = scmp.ne.s32.totalorder %s89, %s103
    %p105 = scmp.eq.s32.totalorder %s16, 0
    %p106 = por %p104, %p105
    %s107 = ssub.s32 %s10, %s17
    %p108 = scmp.eq.s32.totalorder %s107, 0
    %s110 = sadd.s32 %s109, 1
    %s111 = scalar_select %p108, %s109, %s110
    %p114 = pneg %p108
    %p115 = scmp.eq.s32.totalorder %s10, 1
    %p116 = por %p114, %p115
    %p117 = scmp.ne.s32.totalorder %s109, %s112
    %p118 = scmp.eq.s32.totalorder %s10, 0
    %p119 = por %p117, %p118
    %p120 = scmp.ne.s32.totalorder %s109, %s112
    %p121 = scmp.eq.s32.totalorder %s15, 1
    %p122 = por %p120, %p121
    %p123 = scmp.ne.s32.totalorder %s112, %s113
    %p124 = scmp.eq.s32.totalorder %s15, 0
    %p125 = por %p123, %p124
    %p126 = scmp.ne.s32.totalorder %s112, %s113
    %p127 = scmp.eq.s32.totalorder %s16, 1
    %p128 = por %p126, %p127
    %p130 = scmp.ne.s32.totalorder %s113, %s129
    %p131 = scmp.eq.s32.totalorder %s16, 0
    %p132 = por %p130, %p131
    %p133 = scmp.le.s32.totalorder 1, %s10
    %p134 = scmp.lt.s32.totalorder %s10, 3
    %p135 = pnand %p133, %p134
    %p136 = pneg %p135
    // Predicated region
    $region9: #{cbam_forward.1} parent=5 // pred_check
      _
    $region10: #{cbam_forward.1} parent=5 // pred_check_branch
      %138 = sbr.rel (%p135) target = $region12
    $region11: #{cbam_forward.1} parent=5 // pred_region
      %s139 = ssub.s32 %s10, 1
      // Predicated region
      $region13: #{cbam_forward.1} parent=11 // pred_check
        %p140 = pneg %p57
      $region14: #{cbam_forward.1} parent=11 // pred_check_branch
        %142 = sbr.rel (%p140) target = $region16
      $region15: #{cbam_forward.1} parent=11 // pred_region
        _
      $region16: #{cbam_forward.1} parent=11 // pred_fallthru
        _
      // Predicated region
      $region17: #{cbam_forward.1} parent=11 // pred_check
        %p143 = pneg %p78
      $region18: #{cbam_forward.1} parent=11 // pred_check_branch
        %145 = sbr.rel (%p143) target = $region20
      $region19: #{cbam_forward.1} parent=11 // pred_region
        _
      $region20: #{cbam_forward.1} parent=11 // pred_fallthru
        _
      // Predicated region
      $region21: #{cbam_forward.1} parent=11 // pred_check
        %p146 = pneg %p99
      $region22: #{cbam_forward.1} parent=11 // pred_check_branch
        %148 = sbr.rel (%p146) target = $region24
      $region23: #{cbam_forward.1} parent=11 // pred_region
        _
      $region24: #{cbam_forward.1} parent=11 // pred_fallthru
        _
    $region12: #{cbam_forward.1} parent=5 // pred_fallthru
      _
    %p149 = scmp.lt.s32.totalorder %s10, 2
    // Predicated region
    $region25: #{cbam_forward.1} parent=5 // pred_check
      %p150 = pneg %p149
    $region26: #{cbam_forward.1} parent=5 // pred_check_branch
      %152 = sbr.rel (%p150) target = $region28
    $region27: #{cbam_forward.1} parent=5 // pred_region
      // Predicated region
      $region29: #{cbam_forward.1} parent=27 // pred_check
        %p153 = pneg %p30
      $region30: #{cbam_forward.1} parent=27 // pred_check_branch
        %155 = sbr.rel (%p153) target = $region32
      $region31: #{cbam_forward.1} parent=27 // pred_region
        %p156 = scmp.lt.s32.totalorder %s10, 1
        %s157 = scalar_select %p156, %s10, 1
        %s158 = smul.addr %s157, 16
        %s159 = smul.addr %s158, 8
        %s160 = scalar_lea.vmem %s0, %s159
      $region32: #{cbam_forward.1} parent=27 // pred_fallthru
        _
    $region28: #{cbam_forward.1} parent=5 // pred_fallthru
      _
    %p161 = scmp.le.s32.totalorder 1, %s10
    %p162 = scmp.lt.s32.totalorder %s10, 3
    %p163 = pnand %p161, %p162
    %p164 = pneg %p163
    // Predicated region
    $region33: #{cbam_forward.1} parent=5 // pred_check
      _
    $region34: #{cbam_forward.1} parent=5 // pred_check_branch
      %166 = sbr.rel (%p163) target = $region36
    $region35: #{cbam_forward.1} parent=5 // pred_region
      %s167 = ssub.s32 %s10, 1
      %p168 = scmp.lt.s32.totalorder %s15, 1
      %s169 = scalar_select %p168, %s15, 1
      %s170 = smul.addr %s169, 16
      %s171 = smul.addr %s170, 8
      %s172 = scalar_lea.vmem %s0, %s171
      %p173 = pneg %p36
      %p174 = pneg %p33
      %p175 = pneg %p57
      %p176 = pneg %p54
      %p177 = pneg %p78
      %p178 = pneg %p75
      %p179 = pneg %p99
      %p180 = pneg %p96
      %p181 = pneg %p125
      %p182 = pneg %p122
      %p183 = scmp.lt.s32.totalorder %s15, 1
      %s184 = scalar_select %p183, %s15, 1
      %s185 = smul.addr %s184, 16
      %s186 = smul.addr %s185, 8
      %s187 = scalar_lea.vmem %s4, %s186
      %p188 = scmp.lt.s32.totalorder %s15, 1
      %s189 = scalar_select %p188, %s15, 1
      %s190 = smul.addr %s189, 16
      %s191 = smul.addr %s190, 8
      %s192 = scalar_lea.vmem %s0, %s191
      %p193 = scmp.lt.s32.totalorder %s15, 1
      %s194 = scalar_select %p193, %s15, 1
      %s195 = smul.addr %s194, 16
      %s196 = smul.addr %s195, 8
      %s197 = scalar_lea.vmem %s4, %s196
      %v198 = vld [vmem:[%s192] sm:$0xff]
      %v199 = vld [vmem:[%s192 + $0x8] sm:$0xff]
      %v200 = vld [vmem:[%s192 + $0x10] sm:$0xff]
      %v201 = vld [vmem:[%s192 + $0x18] sm:$0xff]
      %v202 = vld [vmem:[%s192 + $0x20] sm:$0xff]
      %v203 = vld [vmem:[%s192 + $0x28] sm:$0xff]
      %v204 = vld [vmem:[%s192 + $0x30] sm:$0xff]
      %v205 = vld [vmem:[%s192 + $0x38] sm:$0xff]
      %v206 = vld [vmem:[%s192 + $0x40] sm:$0xff]
      %v207 = vld [vmem:[%s192 + $0x48] sm:$0xff]
      %v208 = vld [vmem:[%s192 + $0x50] sm:$0xff]
      %v209 = vld [vmem:[%s192 + $0x58] sm:$0xff]
      %v210 = vld [vmem:[%s192 + $0x60] sm:$0xff]
      %v211 = vld [vmem:[%s192 + $0x68] sm:$0xff]
      %v212 = vld [vmem:[%s192 + $0x70] sm:$0xff]
      %v213 = vld [vmem:[%s192 + $0x78] sm:$0xff]
      %v214 = vadd.f32 %v198, %v199
      %215 = vadd.xlane.f32.xlu0 %v214
      %v216 = vpop.xlane.xlu0 %215
      %v217 = vadd.f32 %v200, %v201
      %218 = vadd.xlane.f32.xlu0 %v217
      %v219 = vpop.xlane.xlu0 %218
      %v220 = vadd.f32 %v202, %v203
      %221 = vadd.xlane.f32.xlu0 %v220
      %v222 = vpop.xlane.xlu0 %221
      %v223 = vadd.f32 %v204, %v205
      %224 = vadd.xlane.f32.xlu0 %v223
      %v225 = vpop.xlane.xlu0 %224
      %v226 = vadd.f32 %v206, %v207
      %227 = vadd.xlane.f32.xlu0 %v226
      %v228 = vpop.xlane.xlu0 %227
      %v229 = vadd.f32 %v208, %v209
      %230 = vadd.xlane.f32.xlu0 %v229
      %v231 = vpop.xlane.xlu0 %230
      %v232 = vadd.f32 %v210, %v211
      %233 = vadd.xlane.f32.xlu0 %v232
      %v234 = vpop.xlane.xlu0 %233
      %v235 = vadd.f32 %v212, %v213
      %236 = vadd.xlane.f32.xlu0 %v235
      %v237 = vpop.xlane.xlu0 %236
      %v238 = vrcp.pop 256.0
      %v239 = vmul.f32 256.0, %v238
      %v240 = vsub.f32 1.0, %v239
      %v241 = vmul.f32 %v238, %v240
      %v242 = vadd.f32 %v238, %v241
      %vm243 = vweird.f32 %v238
      %v244 = vsel %vm243, %v238, %v242
      %v245 = vmul.f32 %v216, %v244
      %v246 = vmul.f32 %v219, %v244
      %v247 = vmul.f32 %v222, %v244
      %v248 = vmul.f32 %v225, %v244
      %v249 = vmul.f32 %v228, %v244
      %v250 = vmul.f32 %v231, %v244
      %v251 = vmul.f32 %v234, %v244
      %v252 = vmul.f32 %v237, %v244
      %v253 = vmax.f32 %v198, %v199
      %254 = vmax.xlane.f32.xlu0 %v253
      %v255 = vpop.xlane.xlu0 %254
      %v256 = vmax.f32 %v200, %v201
      %257 = vmax.xlane.f32.xlu0 %v256
      %v258 = vpop.xlane.xlu0 %257
      %v259 = vmax.f32 %v202, %v203
      %260 = vmax.xlane.f32.xlu0 %v259
      %v261 = vpop.xlane.xlu0 %260
      %v262 = vmax.f32 %v204, %v205
      %263 = vmax.xlane.f32.xlu0 %v262
      %v264 = vpop.xlane.xlu0 %263
      %v265 = vmax.f32 %v206, %v207
      %266 = vmax.xlane.f32.xlu0 %v265
      %v267 = vpop.xlane.xlu0 %266
      %v268 = vmax.f32 %v208, %v209
      %269 = vmax.xlane.f32.xlu0 %v268
      %v270 = vpop.xlane.xlu0 %269
      %v271 = vmax.f32 %v210, %v211
      %272 = vmax.xlane.f32.xlu0 %v271
      %v273 = vpop.xlane.xlu0 %272
      %v274 = vmax.f32 %v212, %v213
      %275 = vmax.xlane.f32.xlu0 %v274
      %v276 = vpop.xlane.xlu0 %275
      %vm277 = vcmask 7168
      %v278 = vsel %vm277, %v245, %v255
      %v279 = vsel %vm277, %v246, %v258
      %v280 = vsel %vm277, %v247, %v261
      %v281 = vsel %vm277, %v248, %v264
      %v282 = vsel %vm277, %v249, %v267
      %v283 = vsel %vm277, %v250, %v270
      %v284 = vsel %vm277, %v251, %v273
      %v285 = vsel %vm277, %v252, %v276
      %v286 = vld [vmem:[%s1] sm:$0xff]
      %v287 = vld [vmem:[%s2] sm:$0xff]
      %v288 = vld [vmem:[%s2 + $0x8] sm:$0xff]
      %v289 = vld [vmem:[%s2 + $0x10] sm:$0xff]
      %v290 = vld [vmem:[%s2 + $0x18] sm:$0xff]
      %v291 = vld [vmem:[%s2 + $0x20] sm:$0xff]
      %v292 = vld [vmem:[%s2 + $0x28] sm:$0xff]
      %v293 = vld [vmem:[%s2 + $0x30] sm:$0xff]
      %v294 = vld [vmem:[%s2 + $0x38] sm:$0xff]
      %vm295 = vcmask 523264
      %v297 = vsel %vm295, %v286, 0
      %299 = vmatpush.msra.mxu0 0.0
      %300 = vmatpush.msra.mxu0 0.0
      %301 = vmatpush.msra.mxu0 0.0
      %302 = vmatpush.msra.mxu0 0.0
      %303 = vmatpush.msra.mxu0 0.0
      %304 = vmatpush.msra.mxu0 0.0
      %305 = vmatpush.msra.mxu0 0.0
      %306 = vmatpush.msra.mxu0 0.0
      %307 = vmatpush.msra.mxu0 %v285
      %308 = vmatpush.msra.mxu0 %v284
      %309 = vmatpush.msra.mxu0 %v283
      %310 = vmatpush.msra.mxu0 %v282
      %311 = vmatpush.msra.mxu0 %v281
      %312 = vmatpush.msra.mxu0 %v280
      %313 = vmatpush.msra.mxu0 %v279
      %314 = vmatpush.msra.mxu0 %v278
      %315 = vmatmul.f32.gmra.mxu0 %v297
      %v316 = vpop.f32.mrf.mxu0
      %v317 = vadd.f32 0.0, %v316
      %318 = vdwg.mxu0
      %v319 = vmax.f32 %v317, 0.0
      %vm320 = vcmask 64512
      %v322 = vsel %vm320, %v287, 0
      %v325 = vsel %vm320, %v288, 0
      %v328 = vsel %vm320, %v289, 0
      %v331 = vsel %vm320, %v290, 0
      %v334 = vsel %vm320, %v291, 0
      %v337 = vsel %vm320, %v292, 0
      %v340 = vsel %vm320, %v293, 0
      %v343 = vsel %vm320, %v294, 0
      %345 = vmatpush.msra.mxu0 0.0
      %346 = vmatpush.msra.mxu0 0.0
      %347 = vmatpush.msra.mxu0 0.0
      %348 = vmatpush.msra.mxu0 0.0
      %349 = vmatpush.msra.mxu0 0.0
      %350 = vmatpush.msra.mxu0 0.0
      %351 = vmatpush.msra.mxu0 0.0
      %352 = vmatpush.msra.mxu0 0.0
      %353 = vmatpush.msra.mxu0 0.0
      %354 = vmatpush.msra.mxu0 0.0
      %355 = vmatpush.msra.mxu0 0.0
      %356 = vmatpush.msra.mxu0 0.0
      %357 = vmatpush.msra.mxu0 0.0
      %358 = vmatpush.msra.mxu0 0.0
      %359 = vmatpush.msra.mxu0 0.0
      %360 = vmatpush.msra.mxu0 %v319
      %361 = vmatmul.f32.gmra.mxu0 %v322
      %v362 = vpop.f32.mrf.mxu0
      %v363 = vadd.f32 0.0, %v362
      %364 = vmatmul.f32.gmra.mxu0 %v325
      %v365 = vpop.f32.mrf.mxu0
      %v366 = vadd.f32 0.0, %v365
      %367 = vmatmul.f32.gmra.mxu0 %v328
      %v368 = vpop.f32.mrf.mxu0
      %v369 = vadd.f32 0.0, %v368
      %370 = vmatmul.f32.gmra.mxu0 %v331
      %v371 = vpop.f32.mrf.mxu0
      %v372 = vadd.f32 0.0, %v371
      %373 = vmatmul.f32.gmra.mxu0 %v334
      %v374 = vpop.f32.mrf.mxu0
      %v375 = vadd.f32 0.0, %v374
      %376 = vmatmul.f32.gmra.mxu0 %v337
      %v377 = vpop.f32.mrf.mxu0
      %v378 = vadd.f32 0.0, %v377
      %379 = vmatmul.f32.gmra.mxu0 %v340
      %v380 = vpop.f32.mrf.mxu0
      %v381 = vadd.f32 0.0, %v380
      %382 = vmatmul.f32.gmra.mxu0 %v343
      %v383 = vpop.f32.mrf.mxu0
      %v384 = vadd.f32 0.0, %v383
      %385 = vdwg.mxu0
      %vm386 = vcmask 15360
      %v387 = vsel %vm386, %v363, 0.0
      %388 = vadd.xlane.f32.xlu0 %v387
      %v389 = vpop.xlane.xlu0 %388
      %v390 = vsel %vm386, %v366, 0.0
      %391 = vadd.xlane.f32.xlu0 %v390
      %v392 = vpop.xlane.xlu0 %391
      %v393 = vsel %vm386, %v369, 0.0
      %394 = vadd.xlane.f32.xlu0 %v393
      %v395 = vpop.xlane.xlu0 %394
      %v396 = vsel %vm386, %v372, 0.0
      %397 = vadd.xlane.f32.xlu0 %v396
      %v398 = vpop.xlane.xlu0 %397
      %v399 = vsel %vm386, %v375, 0.0
      %400 = vadd.xlane.f32.xlu0 %v399
      %v401 = vpop.xlane.xlu0 %400
      %v402 = vsel %vm386, %v378, 0.0
      %403 = vadd.xlane.f32.xlu0 %v402
      %v404 = vpop.xlane.xlu0 %403
      %v405 = vsel %vm386, %v381, 0.0
      %406 = vadd.xlane.f32.xlu0 %v405
      %v407 = vpop.xlane.xlu0 %406
      %v408 = vsel %vm386, %v384, 0.0
      %409 = vadd.xlane.f32.xlu0 %v408
      %v410 = vpop.xlane.xlu0 %409
      %v411 = vsub.f32 0.0, %v389
      %v412 = vsub.f32 0.0, %v392
      %v413 = vsub.f32 0.0, %v395
      %v414 = vsub.f32 0.0, %v398
      %v415 = vsub.f32 0.0, %v401
      %v416 = vsub.f32 0.0, %v404
      %v417 = vsub.f32 0.0, %v407
      %v418 = vsub.f32 0.0, %v410
      %v419 = vmul.f32 %v411, 1.442695
      %v420 = vpow.pop %v419
      %v421 = vmul.f32 %v412, 1.442695
      %v422 = vpow.pop %v421
      %v423 = vmul.f32 %v413, 1.442695
      %v424 = vpow.pop %v423
      %v425 = vmul.f32 %v414, 1.442695
      %v426 = vpow.pop %v425
      %v427 = vmul.f32 %v415, 1.442695
      %v428 = vpow.pop %v427
      %v429 = vmul.f32 %v416, 1.442695
      %v430 = vpow.pop %v429
      %v431 = vmul.f32 %v417, 1.442695
      %v432 = vpow.pop %v431
      %v433 = vmul.f32 %v418, 1.442695
      %v434 = vpow.pop %v433
      %v435 = vadd.f32 %v420, 1.0
      %v436 = vadd.f32 %v422, 1.0
      %v437 = vadd.f32 %v424, 1.0
      %v438 = vadd.f32 %v426, 1.0
      %v439 = vadd.f32 %v428, 1.0
      %v440 = vadd.f32 %v430, 1.0
      %v441 = vadd.f32 %v432, 1.0
      %v442 = vadd.f32 %v434, 1.0
      %v443 = vrcp.pop %v435
      %v444 = vmul.f32 %v435, %v443
      %v445 = vsub.f32 1.0, %v444
      %v446 = vmul.f32 %v443, %v445
      %v447 = vadd.f32 %v443, %v446
      %vm448 = vweird.f32 %v435
      %vm449 = vweird.f32 %v443
      %vm450 = vmor %vm448, %vm449
      %v451 = vsel %vm450, %v443, %v447
      %v452 = vand.u32 2147483647, %v435
      %vm453 = vcmp.eq.f32.partialorder %v452, 8.507059e+37
      %v454 = vand.u32 %v435, 2147483648
      %v455 = vor.u32 1.1754944e-38, %v454
      %v456 = vsel %vm453, %v455, %v451
      %v457 = vmul.f32 1.0, %v456
      %v458 = vrcp.pop %v436
      %v459 = vmul.f32 %v436, %v458
      %v460 = vsub.f32 1.0, %v459
      %v461 = vmul.f32 %v458, %v460
      %v462 = vadd.f32 %v458, %v461
      %vm463 = vweird.f32 %v436
      %vm464 = vweird.f32 %v458
      %vm465 = vmor %vm463, %vm464
      %v466 = vsel %vm465, %v458, %v462
      %v467 = vand.u32 2147483647, %v436
      %vm468 = vcmp.eq.f32.partialorder %v467, 8.507059e+37
      %v469 = vand.u32 %v436, 2147483648
      %v470 = vor.u32 1.1754944e-38, %v469
      %v471 = vsel %vm468, %v470, %v466
      %v472 = vmul.f32 1.0, %v471
      %v473 = vrcp.pop %v437
      %v474 = vmul.f32 %v437, %v473
      %v475 = vsub.f32 1.0, %v474
      %v476 = vmul.f32 %v473, %v475
      %v477 = vadd.f32 %v473, %v476
      %vm478 = vweird.f32 %v437
      %vm479 = vweird.f32 %v473
      %vm480 = vmor %vm478, %vm479
      %v481 = vsel %vm480, %v473, %v477
      %v482 = vand.u32 2147483647, %v437
      %vm483 = vcmp.eq.f32.partialorder %v482, 8.507059e+37
      %v484 = vand.u32 %v437, 2147483648
      %v485 = vor.u32 1.1754944e-38, %v484
      %v486 = vsel %vm483, %v485, %v481
      %v487 = vmul.f32 1.0, %v486
      %v488 = vrcp.pop %v438
      %v489 = vmul.f32 %v438, %v488
      %v490 = vsub.f32 1.0, %v489
      %v491 = vmul.f32 %v488, %v490
      %v492 = vadd.f32 %v488, %v491
      %vm493 = vweird.f32 %v438
      %vm494 = vweird.f32 %v488
      %vm495 = vmor %vm493, %vm494
      %v496 = vsel %vm495, %v488, %v492
      %v497 = vand.u32 2147483647, %v438
      %vm498 = vcmp.eq.f32.partialorder %v497, 8.507059e+37
      %v499 = vand.u32 %v438, 2147483648
      %v500 = vor.u32 1.1754944e-38, %v499
      %v501 = vsel %vm498, %v500, %v496
      %v502 = vmul.f32 1.0, %v501
      %v503 = vrcp.pop %v439
      %v504 = vmul.f32 %v439, %v503
      %v505 = vsub.f32 1.0, %v504
      %v506 = vmul.f32 %v503, %v505
      %v507 = vadd.f32 %v503, %v506
      %vm508 = vweird.f32 %v439
      %vm509 = vweird.f32 %v503
      %vm510 = vmor %vm508, %vm509
      %v511 = vsel %vm510, %v503, %v507
      %v512 = vand.u32 2147483647, %v439
      %vm513 = vcmp.eq.f32.partialorder %v512, 8.507059e+37
      %v514 = vand.u32 %v439, 2147483648
      %v515 = vor.u32 1.1754944e-38, %v514
      %v516 = vsel %vm513, %v515, %v511
      %v517 = vmul.f32 1.0, %v516
      %v518 = vrcp.pop %v440
      %v519 = vmul.f32 %v440, %v518
      %v520 = vsub.f32 1.0, %v519
      %v521 = vmul.f32 %v518, %v520
      %v522 = vadd.f32 %v518, %v521
      %vm523 = vweird.f32 %v440
      %vm524 = vweird.f32 %v518
      %vm525 = vmor %vm523, %vm524
      %v526 = vsel %vm525, %v518, %v522
      %v527 = vand.u32 2147483647, %v440
      %vm528 = vcmp.eq.f32.partialorder %v527, 8.507059e+37
      %v529 = vand.u32 %v440, 2147483648
      %v530 = vor.u32 1.1754944e-38, %v529
      %v531 = vsel %vm528, %v530, %v526
      %v532 = vmul.f32 1.0, %v531
      %v533 = vrcp.pop %v441
      %v534 = vmul.f32 %v441, %v533
      %v535 = vsub.f32 1.0, %v534
      %v536 = vmul.f32 %v533, %v535
      %v537 = vadd.f32 %v533, %v536
      %vm538 = vweird.f32 %v441
      %vm539 = vweird.f32 %v533
      %vm540 = vmor %vm538, %vm539
      %v541 = vsel %vm540, %v533, %v537
      %v542 = vand.u32 2147483647, %v441
      %vm543 = vcmp.eq.f32.partialorder %v542, 8.507059e+37
      %v544 = vand.u32 %v441, 2147483648
      %v545 = vor.u32 1.1754944e-38, %v544
      %v546 = vsel %vm543, %v545, %v541
      %v547 = vmul.f32 1.0, %v546
      %v548 = vrcp.pop %v442
      %v549 = vmul.f32 %v442, %v548
      %v550 = vsub.f32 1.0, %v549
      %v551 = vmul.f32 %v548, %v550
      %v552 = vadd.f32 %v548, %v551
      %vm553 = vweird.f32 %v442
      %vm554 = vweird.f32 %v548
      %vm555 = vmor %vm553, %vm554
      %v556 = vsel %vm555, %v548, %v552
      %v557 = vand.u32 2147483647, %v442
      %vm558 = vcmp.eq.f32.partialorder %v557, 8.507059e+37
      %v559 = vand.u32 %v442, 2147483648
      %v560 = vor.u32 1.1754944e-38, %v559
      %v561 = vsel %vm558, %v560, %v556
      %v562 = vmul.f32 1.0, %v561
      %v563 = vmul.f32 %v198, %v457
      %v564 = vmul.f32 %v199, %v457
      %v565 = vmul.f32 %v200, %v472
      %v566 = vmul.f32 %v201, %v472
      %v567 = vmul.f32 %v202, %v487
      %v568 = vmul.f32 %v203, %v487
      %v569 = vmul.f32 %v204, %v502
      %v570 = vmul.f32 %v205, %v502
      %v571 = vmul.f32 %v206, %v517
      %v572 = vmul.f32 %v207, %v517
      %v573 = vmul.f32 %v208, %v532
      %v574 = vmul.f32 %v209, %v532
      %v575 = vmul.f32 %v210, %v547
      %v576 = vmul.f32 %v211, %v547
      %v577 = vmul.f32 %v212, %v562
      %v578 = vmul.f32 %v213, %v562
      %v579 = vadd.f32 %v563, %v565
      %v580 = vadd.f32 %v579, %v567
      %v581 = vadd.f32 %v580, %v569
      %v582 = vadd.f32 %v581, %v571
      %v583 = vadd.f32 %v582, %v573
      %v584 = vadd.f32 %v583, %v575
      %v585 = vadd.f32 %v584, %v577
      %v586 = vrot.slane %v585, 4
      %v587 = vadd.f32 %v585, %v586
      %v588 = vrot.slane %v587, 2
      %v589 = vadd.f32 %v587, %v588
      %v590 = vrot.slane %v589, 1
      %v591 = vadd.f32 %v589, %v590
      %v592 = vadd.f32 %v564, %v566
      %v593 = vadd.f32 %v592, %v568
      %v594 = vadd.f32 %v593, %v570
      %v595 = vadd.f32 %v594, %v572
      %v596 = vadd.f32 %v595, %v574
      %v597 = vadd.f32 %v596, %v576
      %v598 = vadd.f32 %v597, %v578
      %v599 = vrot.slane %v598, 4
      %v600 = vadd.f32 %v598, %v599
      %v601 = vrot.slane %v600, 2
      %v602 = vadd.f32 %v600, %v601
      %v603 = vrot.slane %v602, 1
      %v604 = vadd.f32 %v602, %v603
      %v605 = vrcp.pop 64.0
      %v606 = vmul.f32 64.0, %v605
      %v607 = vsub.f32 1.0, %v606
      %v608 = vmul.f32 %v605, %v607
      %v609 = vadd.f32 %v605, %v608
      %vm610 = vweird.f32 %v605
      %v611 = vsel %vm610, %v605, %v609
      %v612 = vmul.f32 %v591, %v611
      %v613 = vmul.f32 %v604, %v611
      %v614 = vmax.f32 %v563, %v567
      %v615 = vmax.f32 %v565, %v569
      %v616 = vmax.f32 %v614, %v571
      %v617 = vmax.f32 %v615, %v573
      %v618 = vmax.f32 %v616, %v575
      %v619 = vmax.f32 %v617, %v577
      %v620 = vmax.f32 %v618, %v619
      %v621 = vrot.slane %v620, 4
      %v622 = vmax.f32 %v620, %v621
      %v623 = vrot.slane %v622, 2
      %v624 = vmax.f32 %v622, %v623
      %v625 = vrot.slane %v624, 1
      %v626 = vmax.f32 %v624, %v625
      %v627 = vmax.f32 %v564, %v568
      %v628 = vmax.f32 %v566, %v570
      %v629 = vmax.f32 %v627, %v572
      %v630 = vmax.f32 %v628, %v574
      %v631 = vmax.f32 %v629, %v576
      %v632 = vmax.f32 %v630, %v578
      %v633 = vmax.f32 %v631, %v632
      %v634 = vrot.slane %v633, 4
      %v635 = vmax.f32 %v633, %v634
      %v636 = vrot.slane %v635, 2
      %v637 = vmax.f32 %v635, %v636
      %v638 = vrot.slane %v637, 1
      %v639 = vmax.f32 %v637, %v638
      %v640 = vld [vmem:[%s3] sm:$0xff]
      %v641 = vld [vmem:[%s3 + $0x8] sm:$0xff]
      %v642 = vld [vmem:[%s3 + $0x10] sm:$0xff]
      %v643 = vld [vmem:[%s3 + $0x18] sm:$0xff]
      %v644 = vld [vmem:[%s3 + $0x20] sm:$0xff]
      %v645 = vld [vmem:[%s3 + $0x28] sm:$0xff]
      %v646 = vld [vmem:[%s3 + $0x30] sm:$0xff]
      %v647 = vld [vmem:[%s3 + $0x38] sm:$0xff]
      %v648 = vld [vmem:[%s3 + $0x40] sm:$0xff]
      %v649 = vld [vmem:[%s3 + $0x48] sm:$0xff]
      %v650 = vld [vmem:[%s3 + $0x50] sm:$0xff]
      %v651 = vld [vmem:[%s3 + $0x58] sm:$0xff]
      %v652 = vld [vmem:[%s3 + $0x60] sm:$0xff]
      %v653 = vld [vmem:[%s3 + $0x68] sm:$0xff]
      %v654 = vld [vmem:[%s3 + $0x70] sm:$0xff]
      %v655 = vld [vmem:[%s3 + $0x78] sm:$0xff]
      %v656 = vld [vmem:[%s3 + $0x80] sm:$0xff]
      %v657 = vld [vmem:[%s3 + $0x88] sm:$0xff]
      %v658 = vld [vmem:[%s3 + $0x90] sm:$0xff]
      %v659 = vld [vmem:[%s3 + $0x98] sm:$0xff]
      %v660 = vld [vmem:[%s3 + $0xa0] sm:$0xff]
      %v661 = vld [vmem:[%s3 + $0xa8] sm:$0xff]
      %v662 = vld [vmem:[%s3 + $0xb0] sm:$0xff]
      %v663 = vld [vmem:[%s3 + $0xb8] sm:$0xff]
      %v664 = vld [vmem:[%s3 + $0xc0] sm:$0xff]
      %v665 = vld [vmem:[%s3 + $0xc8] sm:$0xff]
      %v666 = vld [vmem:[%s3 + $0xd0] sm:$0xff]
      %v667 = vld [vmem:[%s3 + $0xd8] sm:$0xff]
      %v668 = vld [vmem:[%s3 + $0xe0] sm:$0xff]
      %v669 = vld [vmem:[%s3 + $0xe8] sm:$0xff]
      %v670 = vld [vmem:[%s3 + $0xf0] sm:$0xff]
      %v671 = vld [vmem:[%s3 + $0xf8] sm:$0xff]
      %v672 = vld [vmem:[%s3 + $0x100] sm:$0xff]
      %v673 = vld [vmem:[%s3 + $0x108] sm:$0xff]
      %v674 = vld [vmem:[%s3 + $0x110] sm:$0xff]
      %v675 = vld [vmem:[%s3 + $0x118] sm:$0xff]
      %v676 = vld [vmem:[%s3 + $0x120] sm:$0xff]
      %v677 = vld [vmem:[%s3 + $0x128] sm:$0xff]
      %v678 = vld [vmem:[%s3 + $0x130] sm:$0xff]
      %v679 = vld [vmem:[%s3 + $0x138] sm:$0xff]
      %v680 = vld [vmem:[%s3 + $0x140] sm:$0xff]
      %v681 = vld [vmem:[%s3 + $0x148] sm:$0xff]
      %v682 = vld [vmem:[%s3 + $0x150] sm:$0xff]
      %v683 = vld [vmem:[%s3 + $0x158] sm:$0xff]
      %v684 = vld [vmem:[%s3 + $0x160] sm:$0xff]
      %v685 = vld [vmem:[%s3 + $0x168] sm:$0xff]
      %v686 = vld [vmem:[%s3 + $0x170] sm:$0xff]
      %v687 = vld [vmem:[%s3 + $0x178] sm:$0xff]
      %v688 = vld [vmem:[%s3 + $0x180] sm:$0xff]
      %v689 = vld [vmem:[%s3 + $0x188] sm:$0xff]
      %v690 = vld [vmem:[%s3 + $0x190] sm:$0xff]
      %v691 = vld [vmem:[%s3 + $0x198] sm:$0xff]
      %v692 = vld [vmem:[%s3 + $0x1a0] sm:$0xff]
      %v693 = vld [vmem:[%s3 + $0x1a8] sm:$0xff]
      %v694 = vld [vmem:[%s3 + $0x1b0] sm:$0xff]
      %v695 = vld [vmem:[%s3 + $0x1b8] sm:$0xff]
      %v696 = vld [vmem:[%s3 + $0x1c0] sm:$0xff]
      %v697 = vld [vmem:[%s3 + $0x1c8] sm:$0xff]
      %v698 = vld [vmem:[%s3 + $0x1d0] sm:$0xff]
      %v699 = vld [vmem:[%s3 + $0x1d8] sm:$0xff]
      %v700 = vld [vmem:[%s3 + $0x1e0] sm:$0xff]
      %v701 = vld [vmem:[%s3 + $0x1e8] sm:$0xff]
      %v702 = vld [vmem:[%s3 + $0x1f0] sm:$0xff]
      %v703 = vld [vmem:[%s3 + $0x1f8] sm:$0xff]
      %v704 = vld [vmem:[%s3 + $0x200] sm:$0xff]
      %v705 = vld [vmem:[%s3 + $0x208] sm:$0xff]
      %v706 = vld [vmem:[%s3 + $0x210] sm:$0xff]
      %v707 = vld [vmem:[%s3 + $0x218] sm:$0xff]
      %v708 = vld [vmem:[%s3 + $0x220] sm:$0xff]
      %v709 = vld [vmem:[%s3 + $0x228] sm:$0xff]
      %v710 = vld [vmem:[%s3 + $0x230] sm:$0xff]
      %v711 = vld [vmem:[%s3 + $0x238] sm:$0xff]
      %v712 = vld [vmem:[%s3 + $0x240] sm:$0xff]
      %v713 = vld [vmem:[%s3 + $0x248] sm:$0xff]
      %v714 = vld [vmem:[%s3 + $0x250] sm:$0xff]
      %v715 = vld [vmem:[%s3 + $0x258] sm:$0xff]
      %v716 = vld [vmem:[%s3 + $0x260] sm:$0xff]
      %v717 = vld [vmem:[%s3 + $0x268] sm:$0xff]
      %v718 = vld [vmem:[%s3 + $0x270] sm:$0xff]
      %v719 = vld [vmem:[%s3 + $0x278] sm:$0xff]
      %v720 = vld [vmem:[%s3 + $0x280] sm:$0xff]
      %v721 = vld [vmem:[%s3 + $0x288] sm:$0xff]
      %v722 = vld [vmem:[%s3 + $0x290] sm:$0xff]
      %v723 = vld [vmem:[%s3 + $0x298] sm:$0xff]
      %v724 = vld [vmem:[%s3 + $0x2a0] sm:$0xff]
      %v725 = vld [vmem:[%s3 + $0x2a8] sm:$0xff]
      %v726 = vld [vmem:[%s3 + $0x2b0] sm:$0xff]
      %v727 = vld [vmem:[%s3 + $0x2b8] sm:$0xff]
      %v728 = vld [vmem:[%s3 + $0x2c0] sm:$0xff]
      %v729 = vld [vmem:[%s3 + $0x2c8] sm:$0xff]
      %v730 = vld [vmem:[%s3 + $0x2d0] sm:$0xff]
      %v731 = vld [vmem:[%s3 + $0x2d8] sm:$0xff]
      %v732 = vld [vmem:[%s3 + $0x2e0] sm:$0xff]
      %v733 = vld [vmem:[%s3 + $0x2e8] sm:$0xff]
      %v734 = vld [vmem:[%s3 + $0x2f0] sm:$0xff]
      %v735 = vld [vmem:[%s3 + $0x2f8] sm:$0xff]
      %v736 = vld [vmem:[%s3 + $0x300] sm:$0xff]
      %v737 = vld [vmem:[%s3 + $0x308] sm:$0xff]
      %v738 = vld [vmem:[%s3 + $0x310] sm:$0xff]
      %v739 = vld [vmem:[%s3 + $0x318] sm:$0xff]
      %v740 = vld [vmem:[%s3 + $0x320] sm:$0xff]
      %v741 = vld [vmem:[%s3 + $0x328] sm:$0xff]
      %v742 = vld [vmem:[%s3 + $0x330] sm:$0xff]
      %v743 = vld [vmem:[%s3 + $0x338] sm:$0xff]
      %v744 = vld [vmem:[%s3 + $0x340] sm:$0xff]
      %v745 = vld [vmem:[%s3 + $0x348] sm:$0xff]
      %v746 = vld [vmem:[%s3 + $0x350] sm:$0xff]
      %v747 = vld [vmem:[%s3 + $0x358] sm:$0xff]
      %v748 = vld [vmem:[%s3 + $0x360] sm:$0xff]
      %v749 = vld [vmem:[%s3 + $0x368] sm:$0xff]
      %v750 = vld [vmem:[%s3 + $0x370] sm:$0xff]
      %v751 = vld [vmem:[%s3 + $0x378] sm:$0xff]
      %v752 = vld [vmem:[%s3 + $0x380] sm:$0xff]
      %v753 = vld [vmem:[%s3 + $0x388] sm:$0xff]
      %v754 = vld [vmem:[%s3 + $0x390] sm:$0xff]
      %v755 = vld [vmem:[%s3 + $0x398] sm:$0xff]
      %v756 = vld [vmem:[%s3 + $0x3a0] sm:$0xff]
      %v757 = vld [vmem:[%s3 + $0x3a8] sm:$0xff]
      %v758 = vld [vmem:[%s3 + $0x3b0] sm:$0xff]
      %v759 = vld [vmem:[%s3 + $0x3b8] sm:$0xff]
      %v760 = vld [vmem:[%s3 + $0x3c0] sm:$0xff]
      %v761 = vld [vmem:[%s3 + $0x3c8] sm:$0xff]
      %v762 = vld [vmem:[%s3 + $0x3d0] sm:$0xff]
      %v763 = vld [vmem:[%s3 + $0x3d8] sm:$0xff]
      %v764 = vld [vmem:[%s3 + $0x3e0] sm:$0xff]
      %v765 = vld [vmem:[%s3 + $0x3e8] sm:$0xff]
      %v766 = vld [vmem:[%s3 + $0x3f0] sm:$0xff]
      %v767 = vld [vmem:[%s3 + $0x3f8] sm:$0xff]
      %768 = vmatpush.msra.mxu0 %v670
      %769 = vmatpush.msra.mxu0 %v668
      %770 = vmatpush.msra.mxu0 %v666
      %771 = vmatpush.msra.mxu0 %v664
      %772 = vmatpush.msra.mxu0 %v662
      %773 = vmatpush.msra.mxu0 %v660
      %774 = vmatpush.msra.mxu0 %v658
      %775 = vmatpush.msra.mxu0 %v656
      %776 = vmatpush.msra.mxu0 %v654
      %777 = vmatpush.msra.mxu0 %v652
      %778 = vmatpush.msra.mxu0 %v650
      %779 = vmatpush.msra.mxu0 %v648
      %780 = vmatpush.msra.mxu0 %v646
      %781 = vmatpush.msra.mxu0 %v644
      %782 = vmatpush.msra.mxu0 %v642
      %783 = vmatpush.msra.mxu0 %v640
      %784 = vmatmul.f32.gmra.mxu0 %v612
      %v785 = vpop.f32.mrf.mxu0
      %v786 = vadd.f32 0.0, %v785
      %787 = vdwg.mxu0
      %788 = vmatpush.msra.mxu0 %v702
      %789 = vmatpush.msra.mxu0 %v700
      %790 = vmatpush.msra.mxu0 %v698
      %791 = vmatpush.msra.mxu0 %v696
      %792 = vmatpush.msra.mxu0 %v694
      %793 = vmatpush.msra.mxu0 %v692
      %794 = vmatpush.msra.mxu0 %v690
      %795 = vmatpush.msra.mxu0 %v688
      %796 = vmatpush.msra.mxu0 %v686
      %797 = vmatpush.msra.mxu0 %v684
      %798 = vmatpush.msra.mxu0 %v682
      %799 = vmatpush.msra.mxu0 %v680
      %800 = vmatpush.msra.mxu0 %v678
      %801 = vmatpush.msra.mxu0 %v676
      %802 = vmatpush.msra.mxu0 %v674
      %803 = vmatpush.msra.mxu0 %v672
      %804 = vmatmul.f32.gmra.mxu0 %v613
      %v805 = vpop.f32.mrf.mxu0
      %v806 = vadd.f32 %v786, %v805
      %807 = vdwg.mxu0
      %808 = vmatpush.msra.mxu0 %v734
      %809 = vmatpush.msra.mxu0 %v732
      %810 = vmatpush.msra.mxu0 %v730
      %811 = vmatpush.msra.mxu0 %v728
      %812 = vmatpush.msra.mxu0 %v726
      %813 = vmatpush.msra.mxu0 %v724
      %814 = vmatpush.msra.mxu0 %v722
      %815 = vmatpush.msra.mxu0 %v720
      %816 = vmatpush.msra.mxu0 %v718
      %817 = vmatpush.msra.mxu0 %v716
      %818 = vmatpush.msra.mxu0 %v714
      %819 = vmatpush.msra.mxu0 %v712
      %820 = vmatpush.msra.mxu0 %v710
      %821 = vmatpush.msra.mxu0 %v708
      %822 = vmatpush.msra.mxu0 %v706
      %823 = vmatpush.msra.mxu0 %v704
      %824 = vmatmul.f32.gmra.mxu0 %v626
      %v825 = vpop.f32.mrf.mxu0
      %v826 = vadd.f32 %v806, %v825
      %827 = vdwg.mxu0
      %828 = vmatpush.msra.mxu0 %v766
      %829 = vmatpush.msra.mxu0 %v764
      %830 = vmatpush.msra.mxu0 %v762
      %831 = vmatpush.msra.mxu0 %v760
      %832 = vmatpush.msra.mxu0 %v758
      %833 = vmatpush.msra.mxu0 %v756
      %834 = vmatpush.msra.mxu0 %v754
      %835 = vmatpush.msra.mxu0 %v752
      %836 = vmatpush.msra.mxu0 %v750
      %837 = vmatpush.msra.mxu0 %v748
      %838 = vmatpush.msra.mxu0 %v746
      %839 = vmatpush.msra.mxu0 %v744
      %840 = vmatpush.msra.mxu0 %v742
      %841 = vmatpush.msra.mxu0 %v740
      %842 = vmatpush.msra.mxu0 %v738
      %843 = vmatpush.msra.mxu0 %v736
      %844 = vmatmul.f32.gmra.mxu0 %v639
      %v845 = vpop.f32.mrf.mxu0
      %v846 = vadd.f32 %v826, %v845
      %847 = vdwg.mxu0
      %848 = vmatpush.msra.mxu0 %v671
      %849 = vmatpush.msra.mxu0 %v669
      %850 = vmatpush.msra.mxu0 %v667
      %851 = vmatpush.msra.mxu0 %v665
      %852 = vmatpush.msra.mxu0 %v663
      %853 = vmatpush.msra.mxu0 %v661
      %854 = vmatpush.msra.mxu0 %v659
      %855 = vmatpush.msra.mxu0 %v657
      %856 = vmatpush.msra.mxu0 %v655
      %857 = vmatpush.msra.mxu0 %v653
      %858 = vmatpush.msra.mxu0 %v651
      %859 = vmatpush.msra.mxu0 %v649
      %860 = vmatpush.msra.mxu0 %v647
      %861 = vmatpush.msra.mxu0 %v645
      %862 = vmatpush.msra.mxu0 %v643
      %863 = vmatpush.msra.mxu0 %v641
      %864 = vmatmul.f32.gmra.mxu0 %v612
      %v865 = vpop.f32.mrf.mxu0
      %v866 = vadd.f32 0.0, %v865
      %867 = vdwg.mxu0
      %868 = vmatpush.msra.mxu0 %v703
      %869 = vmatpush.msra.mxu0 %v701
      %870 = vmatpush.msra.mxu0 %v699
      %871 = vmatpush.msra.mxu0 %v697
      %872 = vmatpush.msra.mxu0 %v695
      %873 = vmatpush.msra.mxu0 %v693
      %874 = vmatpush.msra.mxu0 %v691
      %875 = vmatpush.msra.mxu0 %v689
      %876 = vmatpush.msra.mxu0 %v687
      %877 = vmatpush.msra.mxu0 %v685
      %878 = vmatpush.msra.mxu0 %v683
      %879 = vmatpush.msra.mxu0 %v681
      %880 = vmatpush.msra.mxu0 %v679
      %881 = vmatpush.msra.mxu0 %v677
      %882 = vmatpush.msra.mxu0 %v675
      %883 = vmatpush.msra.mxu0 %v673
      %884 = vmatmul.f32.gmra.mxu0 %v613
      %v885 = vpop.f32.mrf.mxu0
      %v886 = vadd.f32 %v866, %v885
      %887 = vdwg.mxu0
      %888 = vmatpush.msra.mxu0 %v735
      %889 = vmatpush.msra.mxu0 %v733
      %890 = vmatpush.msra.mxu0 %v731
      %891 = vmatpush.msra.mxu0 %v729
      %892 = vmatpush.msra.mxu0 %v727
      %893 = vmatpush.msra.mxu0 %v725
      %894 = vmatpush.msra.mxu0 %v723
      %895 = vmatpush.msra.mxu0 %v721
      %896 = vmatpush.msra.mxu0 %v719
      %897 = vmatpush.msra.mxu0 %v717
      %898 = vmatpush.msra.mxu0 %v715
      %899 = vmatpush.msra.mxu0 %v713
      %900 = vmatpush.msra.mxu0 %v711
      %901 = vmatpush.msra.mxu0 %v709
      %902 = vmatpush.msra.mxu0 %v707
      %903 = vmatpush.msra.mxu0 %v705
      %904 = vmatmul.f32.gmra.mxu0 %v626
      %v905 = vpop.f32.mrf.mxu0
      %v906 = vadd.f32 %v886, %v905
      %907 = vdwg.mxu0
      %908 = vmatpush.msra.mxu0 %v767
      %909 = vmatpush.msra.mxu0 %v765
      %910 = vmatpush.msra.mxu0 %v763
      %911 = vmatpush.msra.mxu0 %v761
      %912 = vmatpush.msra.mxu0 %v759
      %913 = vmatpush.msra.mxu0 %v757
      %914 = vmatpush.msra.mxu0 %v755
      %915 = vmatpush.msra.mxu0 %v753
      %916 = vmatpush.msra.mxu0 %v751
      %917 = vmatpush.msra.mxu0 %v749
      %918 = vmatpush.msra.mxu0 %v747
      %919 = vmatpush.msra.mxu0 %v745
      %920 = vmatpush.msra.mxu0 %v743
      %921 = vmatpush.msra.mxu0 %v741
      %922 = vmatpush.msra.mxu0 %v739
      %923 = vmatpush.msra.mxu0 %v737
      %924 = vmatmul.f32.gmra.mxu0 %v639
      %v925 = vpop.f32.mrf.mxu0
      %v926 = vadd.f32 %v906, %v925
      %927 = vdwg.mxu0
      %v928 = vsub.f32 0.0, %v846
      %v929 = vsub.f32 0.0, %v926
      %v930 = vmul.f32 %v928, 1.442695
      %v931 = vpow.pop %v930
      %v932 = vmul.f32 %v929, 1.442695
      %v933 = vpow.pop %v932
      %v934 = vadd.f32 %v931, 1.0
      %v935 = vadd.f32 %v933, 1.0
      %v936 = vrcp.pop %v934
      %v937 = vmul.f32 %v934, %v936
      %v938 = vsub.f32 1.0, %v937
      %v939 = vmul.f32 %v936, %v938
      %v940 = vadd.f32 %v936, %v939
      %vm941 = vweird.f32 %v934
      %vm942 = vweird.f32 %v936
      %vm943 = vmor %vm941, %vm942
      %v944 = vsel %vm943, %v936, %v940
      %v945 = vand.u32 2147483647, %v934
      %vm946 = vcmp.eq.f32.partialorder %v945, 8.507059e+37
      %v947 = vand.u32 %v934, 2147483648
      %v948 = vor.u32 1.1754944e-38, %v947
      %v949 = vsel %vm946, %v948, %v944
      %v950 = vmul.f32 1.0, %v949
      %v951 = vrcp.pop %v935
      %v952 = vmul.f32 %v935, %v951
      %v953 = vsub.f32 1.0, %v952
      %v954 = vmul.f32 %v951, %v953
      %v955 = vadd.f32 %v951, %v954
      %vm956 = vweird.f32 %v935
      %vm957 = vweird.f32 %v951
      %vm958 = vmor %vm956, %vm957
      %v959 = vsel %vm958, %v951, %v955
      %v960 = vand.u32 2147483647, %v935
      %vm961 = vcmp.eq.f32.partialorder %v960, 8.507059e+37
      %v962 = vand.u32 %v935, 2147483648
      %v963 = vor.u32 1.1754944e-38, %v962
      %v964 = vsel %vm961, %v963, %v959
      %v965 = vmul.f32 1.0, %v964
      %v966 = vperm.slane %v950, 0
      %v967 = vperm.slane %v965, 0
      %v968 = vmul.f32 %v563, %v966
      %v969 = vmul.f32 %v564, %v967
      %v970 = vmul.f32 %v565, %v966
      %v971 = vmul.f32 %v566, %v967
      %v972 = vmul.f32 %v567, %v966
      %v973 = vmul.f32 %v568, %v967
      %v974 = vmul.f32 %v569, %v966
      %v975 = vmul.f32 %v570, %v967
      %v976 = vmul.f32 %v571, %v966
      %v977 = vmul.f32 %v572, %v967
      %v978 = vmul.f32 %v573, %v966
      %v979 = vmul.f32 %v574, %v967
      %v980 = vmul.f32 %v575, %v966
      %v981 = vmul.f32 %v576, %v967
      %v982 = vmul.f32 %v577, %v966
      %v983 = vmul.f32 %v578, %v967
      %984 = vst [vmem:[%s197] sm:$0xff] %v968
      %985 = vst [vmem:[%s197 + $0x8] sm:$0xff] %v969
      %986 = vst [vmem:[%s197 + $0x10] sm:$0xff] %v970
      %987 = vst [vmem:[%s197 + $0x18] sm:$0xff] %v971
      %988 = vst [vmem:[%s197 + $0x20] sm:$0xff] %v972
      %989 = vst [vmem:[%s197 + $0x28] sm:$0xff] %v973
      %990 = vst [vmem:[%s197 + $0x30] sm:$0xff] %v974
      %991 = vst [vmem:[%s197 + $0x38] sm:$0xff] %v975
      %992 = vst [vmem:[%s197 + $0x40] sm:$0xff] %v976
      %993 = vst [vmem:[%s197 + $0x48] sm:$0xff] %v977
      %994 = vst [vmem:[%s197 + $0x50] sm:$0xff] %v978
      %995 = vst [vmem:[%s197 + $0x58] sm:$0xff] %v979
      %996 = vst [vmem:[%s197 + $0x60] sm:$0xff] %v980
      %997 = vst [vmem:[%s197 + $0x68] sm:$0xff] %v981
      %998 = vst [vmem:[%s197 + $0x70] sm:$0xff] %v982
      %999 = vst [vmem:[%s197 + $0x78] sm:$0xff] %v983
      %p1000 = scmp.lt.s32.totalorder %s15, 1
      %s1001 = scalar_select %p1000, %s15, 1
      %s1002 = smul.addr %s1001, 16
      %s1003 = smul.addr %s1002, 8
      %s1004 = scalar_lea.vmem %s4, %s1003
      // Predicated region
      $region37: #{cbam_forward.1} parent=35 // pred_check
        %p1005 = pneg %p122
      $region38: #{cbam_forward.1} parent=35 // pred_check_branch
        %1007 = sbr.rel (%p1005) target = $region40
      $region39: #{cbam_forward.1} parent=35 // pred_region
        _
      $region40: #{cbam_forward.1} parent=35 // pred_fallthru
        _
    $region36: #{cbam_forward.1} parent=5 // pred_fallthru
      _
    %p1008 = scmp.le.s32.totalorder 2, %s10
    // Predicated region
    $region41: #{cbam_forward.1} parent=5 // pred_check
      %p1009 = pneg %p1008
    $region42: #{cbam_forward.1} parent=5 // pred_check_branch
      %1011 = sbr.rel (%p1009) target = $region44
    $region43: #{cbam_forward.1} parent=5 // pred_region
      %s1012 = ssub.s32 %s10, 2
      // Predicated region
      $region45: #{cbam_forward.1} parent=43 // pred_check
        %p1013 = pneg %p128
      $region46: #{cbam_forward.1} parent=43 // pred_check_branch
        %1015 = sbr.rel (%p1013) target = $region48
      $region47: #{cbam_forward.1} parent=43 // pred_region
        %p1016 = scmp.lt.s32.totalorder %s16, 1
        %s1017 = scalar_select %p1016, %s16, 1
        %s1018 = smul.addr %s1017, 16
        %s1019 = smul.addr %s1018, 8
        %s1020 = scalar_lea.vmem %s4, %s1019
      $region48: #{cbam_forward.1} parent=43 // pred_fallthru
        _
    $region44: #{cbam_forward.1} parent=5 // pred_fallthru
      _
  $region6: #{cbam_forward.1} parent=0 // loop_footer
    %s14 = sadd.s32 1, %s10
  $region7: #{cbam_forward.1} parent=0 // loop_footer_branch
    %9 = sbr.rel target = $region3
  $region8: #{cbam_forward.1} parent=0 // loop_exit
    _

</llo_original>
